<compile_context>
chip_gen: v5e
topology: v5e:2x2
jax: 0.10.0
libtpu: 0.0.40
codegen_flags: <defaults>
</compile_context>

<pallas_src>
import functools

import jax
import jax.numpy as jnp
from jax import lax
from jax.experimental import pallas as pl
from jax.experimental.pallas import tpu as pltpu

# ----------------------------- configuration --------------------------------
B, C, H, W = 2, 4, 16, 16          # input image batch (NCHW)
D_IN = C * H * W                   # flattened backbone input dim = 1024
DIM = 32                           # representation dim (backbone output)
HIDDEN = 64                        # projection_hidden_size
PROJ = 16                          # projection_size
BN_EPS = 1e-5
LANES = 128                        # lane-dense output slab width


def _round_up(n, m):
    return (n + m - 1) // m * m


# ------------------------------- kernel -------------------------------------
def netwrapper_kernel(x_ref, wnet_ref, bnet_ref,
                      w1_ref, b1_ref, gamma_ref, beta_ref,
                      w2_ref, b2_ref,
                      out_ref, *, batch):
    pad_b = out_ref.shape[0]                       # batch padded to multiple of 8

    # ---- backbone: Linear(D_IN -> DIM); bf16 operands, f32 MXU accumulate ----
    rep = jnp.dot(x_ref[...], wnet_ref[...],
                  preferred_element_type=jnp.float32) + bnet_ref[...]   # [PB, DIM] f32

    # ---- projector layer 1: Linear(DIM -> HIDDEN) ----------------------------
    h = jnp.dot(rep.astype(jnp.bfloat16), w1_ref[...],
                preferred_element_type=jnp.float32) + b1_ref[...]       # [PB, HIDDEN] f32

    # ---- BatchNorm1d (training mode) over the REAL batch rows only -----------
    # Padded sublane rows are excluded from the statistics so the result matches
    # nn.BatchNorm1d on the un-padded batch (biased variance, eps=1e-5).
    inv_n = 1.0 / batch
    if pad_b == batch:
        mean = jnp.sum(h, axis=0, keepdims=True) * inv_n                # [1, HIDDEN]
        diff = h - mean
    else:
        # column mask [PB, 1] broadcast over lanes (cheaper than a full-tile mask)
        row = lax.broadcasted_iota(jnp.int32, (pad_b, 1), 0)
        mask = (row < batch).astype(jnp.float32)
        mean = jnp.sum(h * mask, axis=0, keepdims=True) * inv_n         # [1, HIDDEN]
        diff = (h - mean) * mask
    var = jnp.sum(diff * diff, axis=0, keepdims=True) * inv_n           # biased var

    # Folded BN affine + ReLU in one scale/shift pass (rsqrt -> EUP slot).
    scale = gamma_ref[...] * lax.rsqrt(var + BN_EPS)
    shift = beta_ref[...] - mean * scale
    h = jnp.maximum(h * scale + shift, 0.0)

    # ---- projector layer 2: Linear(HIDDEN -> PROJ) ---------------------------
    proj = jnp.dot(h.astype(jnp.bfloat16), w2_ref[...],
                   preferred_element_type=jnp.float32) + b2_ref[...]    # [PB, PROJ] f32

    # ---- single lane-dense output slab: [rep | proj | zero pad] --------------
    pad = jnp.zeros((pad_b, LANES - DIM - PROJ), jnp.float32)
    out_ref[...] = jnp.concatenate([rep, proj, pad], axis=-1)


# ------------------------------- wrapper -------------------------------------
def netwrapper_forward(x_nchw, params):
    """x_nchw: [B, C, H, W] float32. Returns (projection, representation)."""
    b = x_nchw.shape[0]
    pad_b = _round_up(b, 8)                        # (8,128) sublane alignment

    # flatten NCHW row-major (== torch.flatten(x, 1)); bf16 halves DMA bytes;
    # zero-pad the batch (sublane) dimension to a multiple of 8.
    x_flat = x_nchw.reshape(b, -1).astype(jnp.bfloat16)
    if pad_b != b:
        x_flat = jnp.pad(x_flat, ((0, pad_b - b), (0, 0)))

    full = lambda shape: pl.BlockSpec(shape, lambda: (0,) * len(shape))
    args = (
        x_flat,
        params["w_net"], params["b_net"],
        params["w1"], params["b1"], params["gamma"], params["beta"],
        params["w2"], params["b2"],
    )

    out = pl.pallas_call(
        functools.partial(netwrapper_kernel, batch=b),
        out_shape=jax.ShapeDtypeStruct((pad_b, LANES), jnp.float32),
        in_specs=[full(a.shape) for a in args],
        out_specs=full((pad_b, LANES)),
        compiler_params=pltpu.CompilerParams(vmem_limit_bytes=16 * 1024 * 1024),
    )(*args)

    representation = out[:b, :DIM]
    projection = out[:b, DIM:DIM + PROJ]
    return projection, representation


# --------------------------- deterministic params ----------------------------
def init_params(key):
    ks = jax.random.split(key, 3)

    def linear(k, fan_in, fan_out):
        # torch nn.Linear default: U(-1/sqrt(fan_in), 1/sqrt(fan_in)); stored [in, out].
        bound = fan_in ** -0.5
        kw, kb = jax.random.split(k)
        w = jax.random.uniform(kw, (fan_in, fan_out), jnp.float32, -bound, bound)
        b = jax.random.uniform(kb, (1, fan_out), jnp.float32, -bound, bound)
        # Weights stored/streamed as bf16 (memory-bound kernel); biases stay f32.
        return w.astype(jnp.bfloat16), b

    w_net, b_net = linear(ks[0], D_IN, DIM)
    w1, b1 = linear(ks[1], DIM, HIDDEN)
    w2, b2 = linear(ks[2], HIDDEN, PROJ)
    gamma = jnp.ones((1, HIDDEN), jnp.float32)     # BatchNorm1d affine init
    beta = jnp.zeros((1, HIDDEN), jnp.float32)
    return dict(w_net=w_net, b_net=b_net, w1=w1, b1=b1,
                gamma=gamma, beta=beta, w2=w2, b2=b2)


# ------------------------------ reference ------------------------------------
def reference_forward(x_nchw, p):
    """Pure-JAX reference with the same bf16 operand rounding, f32 math."""
    f32 = lambda a: a.astype(jnp.float32)
    hp = lax.Precision.HIGHEST

    x = f32(x_nchw.reshape(x_nchw.shape[0], -1).astype(jnp.bfloat16))
    rep = jnp.dot(x, f32(p["w_net"]), precision=hp) + p["b_net"]
    h = jnp.dot(f32(rep.astype(jnp.bfloat16)), f32(p["w1"]), precision=hp) + p["b1"]
    mean = h.mean(axis=0, keepdims=True)
    var = ((h - mean) ** 2).mean(axis=0, keepdims=True)
    h = (h - mean) * lax.rsqrt(var + BN_EPS) * p["gamma"] + p["beta"]
    h = jnp.maximum(h, 0.0)
    proj = jnp.dot(f32(h.astype(jnp.bfloat16)), f32(p["w2"]), precision=hp) + p["b2"]
    return proj, rep


# --------------------------------- main ---------------------------------------
if __name__ == "__main__":
    key = jax.random.PRNGKey(0)
    k_x, k_p = jax.random.split(key)
    x = jax.random.normal(k_x, (B, C, H, W), jnp.float32)   # NCHW input
    params = init_params(k_p)

    proj, rep = netwrapper_forward(x, params)
    jax.block_until_ready((proj, rep))

    proj_ref, rep_ref = reference_forward(x, params)
    assert proj.shape == (B, PROJ) and rep.shape == (B, DIM)
    assert jnp.allclose(proj, proj_ref, atol=1e-3, rtol=1e-3)
    assert jnp.allclose(rep, rep_ref, atol=1e-3, rtol=1e-3)

    print("KERNEL_OK")
</pallas_src>

<mosaic_0001>
module attributes {stable_mosaic.version = 11 : i64} {
  func.func @netwrapper_kernel(%arg0: memref<8x1024xbf16, #tpu.memory_space<vmem>>, %arg1: memref<1024x32xbf16, #tpu.memory_space<vmem>>, %arg2: memref<1x32xf32, #tpu.memory_space<vmem>>, %arg3: memref<32x64xbf16, #tpu.memory_space<vmem>>, %arg4: memref<1x64xf32, #tpu.memory_space<vmem>>, %arg5: memref<1x64xf32, #tpu.memory_space<vmem>>, %arg6: memref<1x64xf32, #tpu.memory_space<vmem>>, %arg7: memref<64x16xbf16, #tpu.memory_space<vmem>>, %arg8: memref<1x16xf32, #tpu.memory_space<vmem>>, %arg9: memref<8x128xf32, #tpu.memory_space<vmem>>) attributes {dimension_semantics = [], scalar_prefetch = 0 : i64, scratch_operands = 0 : i64, tpu.core_type = #tpu.core_type<tc>} {
    %c0 = arith.constant 0 : index
    %c0_0 = arith.constant 0 : index
    %0 = vector.load %arg0[%c0, %c0_0] : memref<8x1024xbf16, #tpu.memory_space<vmem>>, vector<8x1024xbf16>
    %c0_1 = arith.constant 0 : index
    %c0_2 = arith.constant 0 : index
    %1 = vector.load %arg1[%c0_1, %c0_2] : memref<1024x32xbf16, #tpu.memory_space<vmem>>, vector<1024x32xbf16>
    %cst = arith.constant dense<0.000000e+00> : vector<8x32xf32>
    %2 = tpu.matmul %0, %1, %cst {dimension_numbers = #tpu.dot_dimension_numbers<[1], [0], [0], [1], [0, 0, 1, 1], [], []>} : vector<8x1024xbf16>, vector<1024x32xbf16>, vector<8x32xf32> -> vector<8x32xf32>
    %c0_3 = arith.constant 0 : index
    %c0_4 = arith.constant 0 : index
    %3 = vector.load %arg2[%c0_3, %c0_4] : memref<1x32xf32, #tpu.memory_space<vmem>>, vector<1x32xf32>
    %4 = vector.broadcast %3 : vector<1x32xf32> to vector<8x32xf32>
    %5 = arith.addf %2, %4 : vector<8x32xf32>
    %6 = arith.truncf %5 : vector<8x32xf32> to vector<8x32xbf16>
    %c0_5 = arith.constant 0 : index
    %c0_6 = arith.constant 0 : index
    %7 = vector.load %arg3[%c0_5, %c0_6] : memref<32x64xbf16, #tpu.memory_space<vmem>>, vector<32x64xbf16>
    %cst_7 = arith.constant dense<0.000000e+00> : vector<8x64xf32>
    %8 = tpu.matmul %6, %7, %cst_7 {dimension_numbers = #tpu.dot_dimension_numbers<[1], [0], [0], [1], [0, 0, 1, 1], [], []>} : vector<8x32xbf16>, vector<32x64xbf16>, vector<8x64xf32> -> vector<8x64xf32>
    %c0_8 = arith.constant 0 : index
    %c0_9 = arith.constant 0 : index
    %9 = vector.load %arg4[%c0_8, %c0_9] : memref<1x64xf32, #tpu.memory_space<vmem>>, vector<1x64xf32>
    %10 = vector.broadcast %9 : vector<1x64xf32> to vector<8x64xf32>
    %11 = arith.addf %8, %10 : vector<8x64xf32>
    %12 = tpu.iota {dimensions = array<i32: 0>} : vector<8x1xi32>
    %c2_i32 = arith.constant 2 : i32
    %13 = vector.broadcast %c2_i32 : i32 to vector<8x1xi32>
    %14 = arith.cmpi slt, %12, %13 : vector<8x1xi32>
    %15 = arith.extui %14 : vector<8x1xi1> to vector<8x1xi32>
    %16 = arith.sitofp %15 : vector<8x1xi32> to vector<8x1xf32>
    %17 = vector.broadcast %16 : vector<8x1xf32> to vector<8x64xf32>
    %18 = arith.mulf %11, %17 : vector<8x64xf32>
    %cst_10 = arith.constant dense<0.000000e+00> : vector<64xf32>
    %19 = vector.multi_reduction <add>, %18, %cst_10 [0] : vector<8x64xf32> to vector<64xf32>
    %20 = vector.shape_cast %19 : vector<64xf32> to vector<1x64xf32>
    %cst_11 = arith.constant 5.000000e-01 : f32
    %21 = vector.broadcast %cst_11 : f32 to vector<1x64xf32>
    %22 = arith.mulf %20, %21 : vector<1x64xf32>
    %23 = vector.broadcast %22 : vector<1x64xf32> to vector<8x64xf32>
    %24 = arith.subf %11, %23 : vector<8x64xf32>
    %25 = vector.broadcast %16 : vector<8x1xf32> to vector<8x64xf32>
    %26 = arith.mulf %24, %25 : vector<8x64xf32>
    %27 = arith.mulf %26, %26 : vector<8x64xf32>
    %cst_12 = arith.constant dense<0.000000e+00> : vector<64xf32>
    %28 = vector.multi_reduction <add>, %27, %cst_12 [0] : vector<8x64xf32> to vector<64xf32>
    %29 = vector.shape_cast %28 : vector<64xf32> to vector<1x64xf32>
    %cst_13 = arith.constant 5.000000e-01 : f32
    %30 = vector.broadcast %cst_13 : f32 to vector<1x64xf32>
    %31 = arith.mulf %29, %30 : vector<1x64xf32>
    %c0_14 = arith.constant 0 : index
    %c0_15 = arith.constant 0 : index
    %32 = vector.load %arg5[%c0_14, %c0_15] : memref<1x64xf32, #tpu.memory_space<vmem>>, vector<1x64xf32>
    %cst_16 = arith.constant 9.99999974E-6 : f32
    %33 = vector.broadcast %cst_16 : f32 to vector<1x64xf32>
    %34 = arith.addf %31, %33 : vector<1x64xf32>
    %35 = math.rsqrt %34 : vector<1x64xf32>
    %36 = arith.mulf %32, %35 : vector<1x64xf32>
    %c0_17 = arith.constant 0 : index
    %c0_18 = arith.constant 0 : index
    %37 = vector.load %arg6[%c0_17, %c0_18] : memref<1x64xf32, #tpu.memory_space<vmem>>, vector<1x64xf32>
    %38 = arith.mulf %22, %36 : vector<1x64xf32>
    %39 = arith.subf %37, %38 : vector<1x64xf32>
    %40 = vector.broadcast %36 : vector<1x64xf32> to vector<8x64xf32>
    %41 = arith.mulf %11, %40 : vector<8x64xf32>
    %42 = vector.broadcast %39 : vector<1x64xf32> to vector<8x64xf32>
    %43 = arith.addf %41, %42 : vector<8x64xf32>
    %cst_19 = arith.constant 0.000000e+00 : f32
    %44 = vector.broadcast %cst_19 : f32 to vector<8x64xf32>
    %45 = arith.maximumf %43, %44 : vector<8x64xf32>
    %46 = arith.truncf %45 : vector<8x64xf32> to vector<8x64xbf16>
    %c0_20 = arith.constant 0 : index
    %c0_21 = arith.constant 0 : index
    %47 = vector.load %arg7[%c0_20, %c0_21] : memref<64x16xbf16, #tpu.memory_space<vmem>>, vector<64x16xbf16>
    %cst_22 = arith.constant dense<0.000000e+00> : vector<8x16xf32>
    %48 = tpu.matmul %46, %47, %cst_22 {dimension_numbers = #tpu.dot_dimension_numbers<[1], [0], [0], [1], [0, 0, 1, 1], [], []>} : vector<8x64xbf16>, vector<64x16xbf16>, vector<8x16xf32> -> vector<8x16xf32>
    %c0_23 = arith.constant 0 : index
    %c0_24 = arith.constant 0 : index
    %49 = vector.load %arg8[%c0_23, %c0_24] : memref<1x16xf32, #tpu.memory_space<vmem>>, vector<1x16xf32>
    %50 = vector.broadcast %49 : vector<1x16xf32> to vector<8x16xf32>
    %51 = arith.addf %48, %50 : vector<8x16xf32>
    %cst_25 = arith.constant 0.000000e+00 : f32
    %52 = vector.broadcast %cst_25 : f32 to vector<8x80xf32>
    %53 = tpu.concatenate %5, %51, %52 in 1 : vector<8x32xf32>, vector<8x16xf32>, vector<8x80xf32> -> vector<8x128xf32>
    %c0_26 = arith.constant 0 : index
    %c0_27 = arith.constant 0 : index
    %54 = vector.load %arg9[%c0_26, %c0_27] : memref<8x128xf32, #tpu.memory_space<vmem>>, vector<8x128xf32>
    tpu.vector_store %arg9[%c0_26, %c0_27], %53 {strides = array<i32>} : memref<8x128xf32, #tpu.memory_space<vmem>>, vector<8x128xf32>,
    return
  }
}

</mosaic_0001>

<llo_original>
// kernel: tpu_custom_call.1
$region0: #{tpu_custom_call.1}
  #allocation0 [shape = 'u32[]', space=smem, size = 0x4, offset = 0x4, fixed_abs, tag = 'smem constant byte address 0x4 - core index']
  #allocation1 [shape = 'u32[72,128]{1,0:T(1,128)}', space=vmem, size = 0x9000, scoped, tag = 'internal scratch']
  %s0 = inlined_call_operand.vmem [shape: bf16[8,1024], index: 0, kind: input, shape index: {}]
  %s1 = inlined_call_operand.vmem [shape: bf16[1024,32], index: 1, kind: input, shape index: {}]
  %s2 = inlined_call_operand.vmem [shape: f32[1,32], index: 2, kind: input, shape index: {}]
  %s3 = inlined_call_operand.vmem [shape: bf16[32,64], index: 3, kind: input, shape index: {}]
  %s4 = inlined_call_operand.vmem [shape: f32[1,64], index: 4, kind: input, shape index: {}]
  %s5 = inlined_call_operand.vmem [shape: f32[1,64], index: 5, kind: input, shape index: {}]
  %s6 = inlined_call_operand.vmem [shape: f32[1,64], index: 6, kind: input, shape index: {}]
  %s7 = inlined_call_operand.vmem [shape: bf16[64,16], index: 7, kind: input, shape index: {}]
  %s8 = inlined_call_operand.vmem [shape: f32[1,16], index: 8, kind: input, shape index: {}]
  %s9 = inlined_call_operand.hbm [shape: f32[8,128], index: 9, kind: output, shape index: {}]
  %s10 = sld [smem:[#allocation0]]
  $region46: #{tpu_custom_call.1} parent=0
    _
  %s12 = ssub.s32 1, %s10
  %s13 = scalar_select 0, %s12, %s10
  $region1: #{tpu_custom_call.1} parent=0
    #allocation2 [shape = 'u8[4096]{0}', space=vmem, size = 0x1000, scoped, tag = 'output window, operand 0, single buffered']
    #allocation3 [shape = 's32[1]{0}', space=sflag, size = 0x4, scoped, tag = 'scoped memory for tpu_custom_call.1']
    %14 = vsyncpa [#allocation3], 0
    // Predicated region
    $region2: #{tpu_custom_call.1} parent=1 // pred_check
      _
    $region3: #{tpu_custom_call.1} parent=1 // pred_check_branch
      %16 = sbr.rel (0) target = $region5
    $region4: #{tpu_custom_call.1} parent=1 // pred_region
      _
    $region5: #{tpu_custom_call.1} parent=1 // pred_fallthru
      _
    // Predicated region
    $region6: #{tpu_custom_call.1} parent=1 // pred_check
      _
    $region7: #{tpu_custom_call.1} parent=1 // pred_check_branch
      %18 = sbr.rel (0) target = $region9
    $region8: #{tpu_custom_call.1} parent=1 // pred_region
      _
    $region9: #{tpu_custom_call.1} parent=1 // pred_fallthru
      _
    // Predicated region
    $region10: #{tpu_custom_call.1} parent=1 // pred_check
      _
    $region11: #{tpu_custom_call.1} parent=1 // pred_check_branch
      %20 = sbr.rel (0) target = $region13
    $region12: #{tpu_custom_call.1} parent=1 // pred_region
      _
    $region13: #{tpu_custom_call.1} parent=1 // pred_fallthru
      _
    // Predicated region
    $region14: #{tpu_custom_call.1} parent=1 // pred_check
      _
    $region15: #{tpu_custom_call.1} parent=1 // pred_check_branch
      %22 = sbr.rel (0) target = $region17
    $region16: #{tpu_custom_call.1} parent=1 // pred_region
      _
    $region17: #{tpu_custom_call.1} parent=1 // pred_fallthru
      _
    // Predicated region
    $region18: #{tpu_custom_call.1} parent=1 // pred_check
      _
    $region19: #{tpu_custom_call.1} parent=1 // pred_check_branch
      %24 = sbr.rel (0) target = $region21
    $region20: #{tpu_custom_call.1} parent=1 // pred_region
      _
    $region21: #{tpu_custom_call.1} parent=1 // pred_fallthru
      _
    // Predicated region
    $region22: #{tpu_custom_call.1} parent=1 // pred_check
      _
    $region23: #{tpu_custom_call.1} parent=1 // pred_check_branch
      %26 = sbr.rel (0) target = $region25
    $region24: #{tpu_custom_call.1} parent=1 // pred_region
      _
    $region25: #{tpu_custom_call.1} parent=1 // pred_fallthru
      _
    // Predicated region
    $region26: #{tpu_custom_call.1} parent=1 // pred_check
      _
    $region27: #{tpu_custom_call.1} parent=1 // pred_check_branch
      %28 = sbr.rel (0) target = $region29
    $region28: #{tpu_custom_call.1} parent=1 // pred_region
      _
    $region29: #{tpu_custom_call.1} parent=1 // pred_fallthru
      _
    // Predicated region
    $region30: #{tpu_custom_call.1} parent=1 // pred_check
      _
    $region31: #{tpu_custom_call.1} parent=1 // pred_check_branch
      %30 = sbr.rel (0) target = $region33
    $region32: #{tpu_custom_call.1} parent=1 // pred_region
      _
    $region33: #{tpu_custom_call.1} parent=1 // pred_fallthru
      _
    // Predicated region
    $region34: #{tpu_custom_call.1} parent=1 // pred_check
      _
    $region35: #{tpu_custom_call.1} parent=1 // pred_check_branch
      %32 = sbr.rel (0) target = $region37
    $region36: #{tpu_custom_call.1} parent=1 // pred_region
      _
    $region37: #{tpu_custom_call.1} parent=1 // pred_fallthru
      _
    %v34 = vld [vmem:[%s0] sm:$0xff]
    %v35 = vld [vmem:[%s0 + $0x8] sm:$0xff]
    %v36 = vld [vmem:[%s0 + $0x10] sm:$0xff]
    %v37 = vld [vmem:[%s0 + $0x18] sm:$0xff]
    %v38 = vld [vmem:[%s1] sm:$0xf]
    %v39 = vld [vmem:[%s1 + $0x4] sm:$0xf]
    %v40 = vld [vmem:[%s1 + $0x8] sm:$0xf]
    %v41 = vld [vmem:[%s1 + $0xc] sm:$0xf]
    %v42 = vld [vmem:[%s1 + $0x10] sm:$0xf]
    %v43 = vld [vmem:[%s1 + $0x14] sm:$0xf]
    %v44 = vld [vmem:[%s1 + $0x18] sm:$0xf]
    %v45 = vld [vmem:[%s1 + $0x1c] sm:$0xf]
    %v46 = vld [vmem:[%s1 + $0x20] sm:$0xf]
    %v47 = vld [vmem:[%s1 + $0x24] sm:$0xf]
    %v48 = vld [vmem:[%s1 + $0x28] sm:$0xf]
    %v49 = vld [vmem:[%s1 + $0x2c] sm:$0xf]
    %v50 = vld [vmem:[%s1 + $0x30] sm:$0xf]
    %v51 = vld [vmem:[%s1 + $0x34] sm:$0xf]
    %v52 = vld [vmem:[%s1 + $0x38] sm:$0xf]
    %v53 = vld [vmem:[%s1 + $0x3c] sm:$0xf]
    %v54 = vld [vmem:[%s1 + $0x40] sm:$0xf]
    %v55 = vld [vmem:[%s1 + $0x44] sm:$0xf]
    %v56 = vld [vmem:[%s1 + $0x48] sm:$0xf]
    %v57 = vld [vmem:[%s1 + $0x4c] sm:$0xf]
    %v58 = vld [vmem:[%s1 + $0x50] sm:$0xf]
    %v59 = vld [vmem:[%s1 + $0x54] sm:$0xf]
    %v60 = vld [vmem:[%s1 + $0x58] sm:$0xf]
    %v61 = vld [vmem:[%s1 + $0x5c] sm:$0xf]
    %v62 = vld [vmem:[%s1 + $0x60] sm:$0xf]
    %v63 = vld [vmem:[%s1 + $0x64] sm:$0xf]
    %v64 = vld [vmem:[%s1 + $0x68] sm:$0xf]
    %v65 = vld [vmem:[%s1 + $0x6c] sm:$0xf]
    %v66 = vld [vmem:[%s1 + $0x70] sm:$0xf]
    %v67 = vld [vmem:[%s1 + $0x74] sm:$0xf]
    %v68 = vld [vmem:[%s1 + $0x78] sm:$0xf]
    %v69 = vld [vmem:[%s1 + $0x7c] sm:$0xf]
    %v70 = vld [vmem:[%s1 + $0x80] sm:$0xf]
    %v71 = vld [vmem:[%s1 + $0x84] sm:$0xf]
    %v72 = vld [vmem:[%s1 + $0x88] sm:$0xf]
    %v73 = vld [vmem:[%s1 + $0x8c] sm:$0xf]
    %v74 = vld [vmem:[%s1 + $0x90] sm:$0xf]
    %v75 = vld [vmem:[%s1 + $0x94] sm:$0xf]
    %v76 = vld [vmem:[%s1 + $0x98] sm:$0xf]
    %v77 = vld [vmem:[%s1 + $0x9c] sm:$0xf]
    %v78 = vld [vmem:[%s1 + $0xa0] sm:$0xf]
    %v79 = vld [vmem:[%s1 + $0xa4] sm:$0xf]
    %v80 = vld [vmem:[%s1 + $0xa8] sm:$0xf]
    %v81 = vld [vmem:[%s1 + $0xac] sm:$0xf]
    %v82 = vld [vmem:[%s1 + $0xb0] sm:$0xf]
    %v83 = vld [vmem:[%s1 + $0xb4] sm:$0xf]
    %v84 = vld [vmem:[%s1 + $0xb8] sm:$0xf]
    %v85 = vld [vmem:[%s1 + $0xbc] sm:$0xf]
    %v86 = vld [vmem:[%s1 + $0xc0] sm:$0xf]
    %v87 = vld [vmem:[%s1 + $0xc4] sm:$0xf]
    %v88 = vld [vmem:[%s1 + $0xc8] sm:$0xf]
    %v89 = vld [vmem:[%s1 + $0xcc] sm:$0xf]
    %v90 = vld [vmem:[%s1 + $0xd0] sm:$0xf]
    %v91 = vld [vmem:[%s1 + $0xd4] sm:$0xf]
    %v92 = vld [vmem:[%s1 + $0xd8] sm:$0xf]
    %v93 = vld [vmem:[%s1 + $0xdc] sm:$0xf]
    %v94 = vld [vmem:[%s1 + $0xe0] sm:$0xf]
    %v95 = vld [vmem:[%s1 + $0xe4] sm:$0xf]
    %v96 = vld [vmem:[%s1 + $0xe8] sm:$0xf]
    %v97 = vld [vmem:[%s1 + $0xec] sm:$0xf]
    %v98 = vld [vmem:[%s1 + $0xf0] sm:$0xf]
    %v99 = vld [vmem:[%s1 + $0xf4] sm:$0xf]
    %v100 = vld [vmem:[%s1 + $0xf8] sm:$0xf]
    %v101 = vld [vmem:[%s1 + $0xfc] sm:$0xf]
    %v102 = vld [vmem:[%s1 + $0x100] sm:$0xf]
    %v103 = vld [vmem:[%s1 + $0x104] sm:$0xf]
    %v104 = vld [vmem:[%s1 + $0x108] sm:$0xf]
    %v105 = vld [vmem:[%s1 + $0x10c] sm:$0xf]
    %v106 = vld [vmem:[%s1 + $0x110] sm:$0xf]
    %v107 = vld [vmem:[%s1 + $0x114] sm:$0xf]
    %v108 = vld [vmem:[%s1 + $0x118] sm:$0xf]
    %v109 = vld [vmem:[%s1 + $0x11c] sm:$0xf]
    %v110 = vld [vmem:[%s1 + $0x120] sm:$0xf]
    %v111 = vld [vmem:[%s1 + $0x124] sm:$0xf]
    %v112 = vld [vmem:[%s1 + $0x128] sm:$0xf]
    %v113 = vld [vmem:[%s1 + $0x12c] sm:$0xf]
    %v114 = vld [vmem:[%s1 + $0x130] sm:$0xf]
    %v115 = vld [vmem:[%s1 + $0x134] sm:$0xf]
    %v116 = vld [vmem:[%s1 + $0x138] sm:$0xf]
    %v117 = vld [vmem:[%s1 + $0x13c] sm:$0xf]
    %v118 = vld [vmem:[%s1 + $0x140] sm:$0xf]
    %v119 = vld [vmem:[%s1 + $0x144] sm:$0xf]
    %v120 = vld [vmem:[%s1 + $0x148] sm:$0xf]
    %v121 = vld [vmem:[%s1 + $0x14c] sm:$0xf]
    %v122 = vld [vmem:[%s1 + $0x150] sm:$0xf]
    %v123 = vld [vmem:[%s1 + $0x154] sm:$0xf]
    %v124 = vld [vmem:[%s1 + $0x158] sm:$0xf]
    %v125 = vld [vmem:[%s1 + $0x15c] sm:$0xf]
    %v126 = vld [vmem:[%s1 + $0x160] sm:$0xf]
    %v127 = vld [vmem:[%s1 + $0x164] sm:$0xf]
    %v128 = vld [vmem:[%s1 + $0x168] sm:$0xf]
    %v129 = vld [vmem:[%s1 + $0x16c] sm:$0xf]
    %v130 = vld [vmem:[%s1 + $0x170] sm:$0xf]
    %v131 = vld [vmem:[%s1 + $0x174] sm:$0xf]
    %v132 = vld [vmem:[%s1 + $0x178] sm:$0xf]
    %v133 = vld [vmem:[%s1 + $0x17c] sm:$0xf]
    %v134 = vld [vmem:[%s1 + $0x180] sm:$0xf]
    %v135 = vld [vmem:[%s1 + $0x184] sm:$0xf]
    %v136 = vld [vmem:[%s1 + $0x188] sm:$0xf]
    %v137 = vld [vmem:[%s1 + $0x18c] sm:$0xf]
    %v138 = vld [vmem:[%s1 + $0x190] sm:$0xf]
    %v139 = vld [vmem:[%s1 + $0x194] sm:$0xf]
    %v140 = vld [vmem:[%s1 + $0x198] sm:$0xf]
    %v141 = vld [vmem:[%s1 + $0x19c] sm:$0xf]
    %v142 = vld [vmem:[%s1 + $0x1a0] sm:$0xf]
    %v143 = vld [vmem:[%s1 + $0x1a4] sm:$0xf]
    %v144 = vld [vmem:[%s1 + $0x1a8] sm:$0xf]
    %v145 = vld [vmem:[%s1 + $0x1ac] sm:$0xf]
    %v146 = vld [vmem:[%s1 + $0x1b0] sm:$0xf]
    %v147 = vld [vmem:[%s1 + $0x1b4] sm:$0xf]
    %v148 = vld [vmem:[%s1 + $0x1b8] sm:$0xf]
    %v149 = vld [vmem:[%s1 + $0x1bc] sm:$0xf]
    %v150 = vld [vmem:[%s1 + $0x1c0] sm:$0xf]
    %v151 = vld [vmem:[%s1 + $0x1c4] sm:$0xf]
    %v152 = vld [vmem:[%s1 + $0x1c8] sm:$0xf]
    %v153 = vld [vmem:[%s1 + $0x1cc] sm:$0xf]
    %v154 = vld [vmem:[%s1 + $0x1d0] sm:$0xf]
    %v155 = vld [vmem:[%s1 + $0x1d4] sm:$0xf]
    %v156 = vld [vmem:[%s1 + $0x1d8] sm:$0xf]
    %v157 = vld [vmem:[%s1 + $0x1dc] sm:$0xf]
    %v158 = vld [vmem:[%s1 + $0x1e0] sm:$0xf]
    %v159 = vld [vmem:[%s1 + $0x1e4] sm:$0xf]
    %v160 = vld [vmem:[%s1 + $0x1e8] sm:$0xf]
    %v161 = vld [vmem:[%s1 + $0x1ec] sm:$0xf]
    %v162 = vld [vmem:[%s1 + $0x1f0] sm:$0xf]
    %v163 = vld [vmem:[%s1 + $0x1f4] sm:$0xf]
    %v164 = vld [vmem:[%s1 + $0x1f8] sm:$0xf]
    %v165 = vld [vmem:[%s1 + $0x1fc] sm:$0xf]
    %v166 = vld [vmem:[%s2] sm:$0x1]
    %v168 = vperm.slane %v166, 0
    %v174 = vunpack.c.l.b16 %v34
    %v175 = vunpack.c.h.b16 %v34
    %v176 = vunpack.c.l.b16 %v35
    %v177 = vunpack.c.h.b16 %v35
    %v178 = vunpack.c.l.b16 %v36
    %v179 = vunpack.c.h.b16 %v36
    %v180 = vunpack.c.l.b16 %v37
    %v181 = vunpack.c.h.b16 %v37
    %v182 = vpack.c.b16 %v174, %v174
    %v183 = vpack.c.b16 %v175, %v175
    %v184 = vpack.c.b16 %v176, %v176
    %v185 = vpack.c.b16 %v177, %v177
    %v186 = vpack.c.b16 %v178, %v178
    %v187 = vpack.c.b16 %v179, %v179
    %v188 = vpack.c.b16 %v180, %v180
    %v189 = vpack.c.b16 %v181, %v181
    %v326 = vunpack.c.l.b16 %v38
    %v327 = vunpack.c.l.b16 %v39
    %v328 = vunpack.c.l.b16 %v40
    %v329 = vunpack.c.l.b16 %v41
    %v330 = vunpack.c.l.b16 %v42
    %v331 = vunpack.c.l.b16 %v43
    %v332 = vunpack.c.l.b16 %v44
    %v333 = vunpack.c.l.b16 %v45
    %v334 = vunpack.c.l.b16 %v46
    %v335 = vunpack.c.l.b16 %v47
    %v336 = vunpack.c.l.b16 %v48
    %v337 = vunpack.c.l.b16 %v49
    %v338 = vunpack.c.l.b16 %v50
    %v339 = vunpack.c.l.b16 %v51
    %v340 = vunpack.c.l.b16 %v52
    %v341 = vunpack.c.l.b16 %v53
    %v342 = vunpack.c.l.b16 %v54
    %v343 = vunpack.c.l.b16 %v55
    %v344 = vunpack.c.l.b16 %v56
    %v345 = vunpack.c.l.b16 %v57
    %v346 = vunpack.c.l.b16 %v58
    %v347 = vunpack.c.l.b16 %v59
    %v348 = vunpack.c.l.b16 %v60
    %v349 = vunpack.c.l.b16 %v61
    %v350 = vunpack.c.l.b16 %v62
    %v351 = vunpack.c.l.b16 %v63
    %v352 = vunpack.c.l.b16 %v64
    %v353 = vunpack.c.l.b16 %v65
    %v354 = vunpack.c.l.b16 %v66
    %v355 = vunpack.c.l.b16 %v67
    %v356 = vunpack.c.l.b16 %v68
    %v357 = vunpack.c.l.b16 %v69
    %v358 = vunpack.c.l.b16 %v70
    %v359 = vunpack.c.l.b16 %v71
    %v360 = vunpack.c.l.b16 %v72
    %v361 = vunpack.c.l.b16 %v73
    %v362 = vunpack.c.l.b16 %v74
    %v363 = vunpack.c.l.b16 %v75
    %v364 = vunpack.c.l.b16 %v76
    %v365 = vunpack.c.l.b16 %v77
    %v366 = vunpack.c.l.b16 %v78
    %v367 = vunpack.c.l.b16 %v79
    %v368 = vunpack.c.l.b16 %v80
    %v369 = vunpack.c.l.b16 %v81
    %v370 = vunpack.c.l.b16 %v82
    %v371 = vunpack.c.l.b16 %v83
    %v372 = vunpack.c.l.b16 %v84
    %v373 = vunpack.c.l.b16 %v85
    %v374 = vunpack.c.l.b16 %v86
    %v375 = vunpack.c.l.b16 %v87
    %v376 = vunpack.c.l.b16 %v88
    %v377 = vunpack.c.l.b16 %v89
    %v378 = vunpack.c.l.b16 %v90
    %v379 = vunpack.c.l.b16 %v91
    %v380 = vunpack.c.l.b16 %v92
    %v381 = vunpack.c.l.b16 %v93
    %v382 = vunpack.c.l.b16 %v94
    %v383 = vunpack.c.l.b16 %v95
    %v384 = vunpack.c.l.b16 %v96
    %v385 = vunpack.c.l.b16 %v97
    %v386 = vunpack.c.l.b16 %v98
    %v387 = vunpack.c.l.b16 %v99
    %v388 = vunpack.c.l.b16 %v100
    %v389 = vunpack.c.l.b16 %v101
    %v390 = vunpack.c.l.b16 %v102
    %v391 = vunpack.c.l.b16 %v103
    %v392 = vunpack.c.l.b16 %v104
    %v393 = vunpack.c.l.b16 %v105
    %v394 = vunpack.c.l.b16 %v106
    %v395 = vunpack.c.l.b16 %v107
    %v396 = vunpack.c.l.b16 %v108
    %v397 = vunpack.c.l.b16 %v109
    %v398 = vunpack.c.l.b16 %v110
    %v399 = vunpack.c.l.b16 %v111
    %v400 = vunpack.c.l.b16 %v112
    %v401 = vunpack.c.l.b16 %v113
    %v402 = vunpack.c.l.b16 %v114
    %v403 = vunpack.c.l.b16 %v115
    %v404 = vunpack.c.l.b16 %v116
    %v405 = vunpack.c.l.b16 %v117
    %v406 = vunpack.c.l.b16 %v118
    %v407 = vunpack.c.l.b16 %v119
    %v408 = vunpack.c.l.b16 %v120
    %v409 = vunpack.c.l.b16 %v121
    %v410 = vunpack.c.l.b16 %v122
    %v411 = vunpack.c.l.b16 %v123
    %v412 = vunpack.c.l.b16 %v124
    %v413 = vunpack.c.l.b16 %v125
    %v414 = vunpack.c.l.b16 %v126
    %v415 = vunpack.c.l.b16 %v127
    %v416 = vunpack.c.l.b16 %v128
    %v417 = vunpack.c.l.b16 %v129
    %v418 = vunpack.c.l.b16 %v130
    %v419 = vunpack.c.l.b16 %v131
    %v420 = vunpack.c.l.b16 %v132
    %v421 = vunpack.c.l.b16 %v133
    %v422 = vunpack.c.l.b16 %v134
    %v423 = vunpack.c.l.b16 %v135
    %v424 = vunpack.c.l.b16 %v136
    %v425 = vunpack.c.l.b16 %v137
    %v426 = vunpack.c.l.b16 %v138
    %v427 = vunpack.c.l.b16 %v139
    %v428 = vunpack.c.l.b16 %v140
    %v429 = vunpack.c.l.b16 %v141
    %v430 = vunpack.c.l.b16 %v142
    %v431 = vunpack.c.l.b16 %v143
    %v432 = vunpack.c.l.b16 %v144
    %v433 = vunpack.c.l.b16 %v145
    %v434 = vunpack.c.l.b16 %v146
    %v435 = vunpack.c.l.b16 %v147
    %v436 = vunpack.c.l.b16 %v148
    %v437 = vunpack.c.l.b16 %v149
    %v438 = vunpack.c.l.b16 %v150
    %v439 = vunpack.c.l.b16 %v151
    %v440 = vunpack.c.l.b16 %v152
    %v441 = vunpack.c.l.b16 %v153
    %v442 = vunpack.c.l.b16 %v154
    %v443 = vunpack.c.l.b16 %v155
    %v444 = vunpack.c.l.b16 %v156
    %v445 = vunpack.c.l.b16 %v157
    %v446 = vunpack.c.l.b16 %v158
    %v447 = vunpack.c.l.b16 %v159
    %v448 = vunpack.c.l.b16 %v160
    %v449 = vunpack.c.l.b16 %v161
    %v450 = vunpack.c.l.b16 %v162
    %v451 = vunpack.c.l.b16 %v163
    %v452 = vunpack.c.l.b16 %v164
    %v453 = vunpack.c.l.b16 %v165
    %v454 = vpack.c.b16 %v327, %v326
    %v455 = vpack.c.b16 %v329, %v328
    %v456 = vpack.c.b16 %v331, %v330
    %v457 = vpack.c.b16 %v333, %v332
    %v458 = vpack.c.b16 %v335, %v334
    %v459 = vpack.c.b16 %v337, %v336
    %v460 = vpack.c.b16 %v339, %v338
    %v461 = vpack.c.b16 %v341, %v340
    %v462 = vpack.c.b16 %v343, %v342
    %v463 = vpack.c.b16 %v345, %v344
    %v464 = vpack.c.b16 %v347, %v346
    %v465 = vpack.c.b16 %v349, %v348
    %v466 = vpack.c.b16 %v351, %v350
    %v467 = vpack.c.b16 %v353, %v352
    %v468 = vpack.c.b16 %v355, %v354
    %v469 = vpack.c.b16 %v357, %v356
    %v470 = vpack.c.b16 %v359, %v358
    %v471 = vpack.c.b16 %v361, %v360
    %v472 = vpack.c.b16 %v363, %v362
    %v473 = vpack.c.b16 %v365, %v364
    %v474 = vpack.c.b16 %v367, %v366
    %v475 = vpack.c.b16 %v369, %v368
    %v476 = vpack.c.b16 %v371, %v370
    %v477 = vpack.c.b16 %v373, %v372
    %v478 = vpack.c.b16 %v375, %v374
    %v479 = vpack.c.b16 %v377, %v376
    %v480 = vpack.c.b16 %v379, %v378
    %v481 = vpack.c.b16 %v381, %v380
    %v482 = vpack.c.b16 %v383, %v382
    %v483 = vpack.c.b16 %v385, %v384
    %v484 = vpack.c.b16 %v387, %v386
    %v485 = vpack.c.b16 %v389, %v388
    %v486 = vpack.c.b16 %v391, %v390
    %v487 = vpack.c.b16 %v393, %v392
    %v488 = vpack.c.b16 %v395, %v394
    %v489 = vpack.c.b16 %v397, %v396
    %v490 = vpack.c.b16 %v399, %v398
    %v491 = vpack.c.b16 %v401, %v400
    %v492 = vpack.c.b16 %v403, %v402
    %v493 = vpack.c.b16 %v405, %v404
    %v494 = vpack.c.b16 %v407, %v406
    %v495 = vpack.c.b16 %v409, %v408
    %v496 = vpack.c.b16 %v411, %v410
    %v497 = vpack.c.b16 %v413, %v412
    %v498 = vpack.c.b16 %v415, %v414
    %v499 = vpack.c.b16 %v417, %v416
    %v500 = vpack.c.b16 %v419, %v418
    %v501 = vpack.c.b16 %v421, %v420
    %v502 = vpack.c.b16 %v423, %v422
    %v503 = vpack.c.b16 %v425, %v424
    %v504 = vpack.c.b16 %v427, %v426
    %v505 = vpack.c.b16 %v429, %v428
    %v506 = vpack.c.b16 %v431, %v430
    %v507 = vpack.c.b16 %v433, %v432
    %v508 = vpack.c.b16 %v435, %v434
    %v509 = vpack.c.b16 %v437, %v436
    %v510 = vpack.c.b16 %v439, %v438
    %v511 = vpack.c.b16 %v441, %v440
    %v512 = vpack.c.b16 %v443, %v442
    %v513 = vpack.c.b16 %v445, %v444
    %v514 = vpack.c.b16 %v447, %v446
    %v515 = vpack.c.b16 %v449, %v448
    %v516 = vpack.c.b16 %v451, %v450
    %v517 = vpack.c.b16 %v453, %v452
    %582 = vmatpush.bf16.msra.mxu0 %v461
    %583 = vmatpush.bf16.msra.mxu0 %v460
    %584 = vmatpush.bf16.msra.mxu0 %v459
    %585 = vmatpush.bf16.msra.mxu0 %v458
    %586 = vmatpush.bf16.msra.mxu0 %v457
    %587 = vmatpush.bf16.msra.mxu0 %v456
    %588 = vmatpush.bf16.msra.mxu0 %v455
    %589 = vmatpush.bf16.msra.mxu0 %v454
    %590 = vmatmul.bf16.gmra.mxu0 %v182
    %v591 = vpop.f32.mrf.mxu0
    %v592 = vadd.f32 %v168, %v591
    %v593 = vpop.f32.mrf.mxu0
    %594 = vdwg.mxu0
    %595 = vmatpush.bf16.msra.mxu0 %v469
    %596 = vmatpush.bf16.msra.mxu0 %v468
    %597 = vmatpush.bf16.msra.mxu0 %v467
    %598 = vmatpush.bf16.msra.mxu0 %v466
    %599 = vmatpush.bf16.msra.mxu0 %v465
    %600 = vmatpush.bf16.msra.mxu0 %v464
    %601 = vmatpush.bf16.msra.mxu0 %v463
    %602 = vmatpush.bf16.msra.mxu0 %v462
    %603 = vmatmul.bf16.gmra.mxu0 %v183
    %v604 = vpop.f32.mrf.mxu0
    %v605 = vadd.f32 %v592, %v604
    %v606 = vpop.f32.mrf.mxu0
    %607 = vdwg.mxu0
    %608 = vmatpush.bf16.msra.mxu0 %v477
    %609 = vmatpush.bf16.msra.mxu0 %v476
    %610 = vmatpush.bf16.msra.mxu0 %v475
    %611 = vmatpush.bf16.msra.mxu0 %v474
    %612 = vmatpush.bf16.msra.mxu0 %v473
    %613 = vmatpush.bf16.msra.mxu0 %v472
    %614 = vmatpush.bf16.msra.mxu0 %v471
    %615 = vmatpush.bf16.msra.mxu0 %v470
    %616 = vmatmul.bf16.gmra.mxu0 %v184
    %v617 = vpop.f32.mrf.mxu0
    %v618 = vadd.f32 %v605, %v617
    %v619 = vpop.f32.mrf.mxu0
    %620 = vdwg.mxu0
    %621 = vmatpush.bf16.msra.mxu0 %v485
    %622 = vmatpush.bf16.msra.mxu0 %v484
    %623 = vmatpush.bf16.msra.mxu0 %v483
    %624 = vmatpush.bf16.msra.mxu0 %v482
    %625 = vmatpush.bf16.msra.mxu0 %v481
    %626 = vmatpush.bf16.msra.mxu0 %v480
    %627 = vmatpush.bf16.msra.mxu0 %v479
    %628 = vmatpush.bf16.msra.mxu0 %v478
    %629 = vmatmul.bf16.gmra.mxu0 %v185
    %v630 = vpop.f32.mrf.mxu0
    %v631 = vadd.f32 %v618, %v630
    %v632 = vpop.f32.mrf.mxu0
    %633 = vdwg.mxu0
    %634 = vmatpush.bf16.msra.mxu0 %v493
    %635 = vmatpush.bf16.msra.mxu0 %v492
    %636 = vmatpush.bf16.msra.mxu0 %v491
    %637 = vmatpush.bf16.msra.mxu0 %v490
    %638 = vmatpush.bf16.msra.mxu0 %v489
    %639 = vmatpush.bf16.msra.mxu0 %v488
    %640 = vmatpush.bf16.msra.mxu0 %v487
    %641 = vmatpush.bf16.msra.mxu0 %v486
    %642 = vmatmul.bf16.gmra.mxu0 %v186
    %v643 = vpop.f32.mrf.mxu0
    %v644 = vadd.f32 %v631, %v643
    %v645 = vpop.f32.mrf.mxu0
    %646 = vdwg.mxu0
    %647 = vmatpush.bf16.msra.mxu0 %v501
    %648 = vmatpush.bf16.msra.mxu0 %v500
    %649 = vmatpush.bf16.msra.mxu0 %v499
    %650 = vmatpush.bf16.msra.mxu0 %v498
    %651 = vmatpush.bf16.msra.mxu0 %v497
    %652 = vmatpush.bf16.msra.mxu0 %v496
    %653 = vmatpush.bf16.msra.mxu0 %v495
    %654 = vmatpush.bf16.msra.mxu0 %v494
    %655 = vmatmul.bf16.gmra.mxu0 %v187
    %v656 = vpop.f32.mrf.mxu0
    %v657 = vadd.f32 %v644, %v656
    %v658 = vpop.f32.mrf.mxu0
    %659 = vdwg.mxu0
    %660 = vmatpush.bf16.msra.mxu0 %v509
    %661 = vmatpush.bf16.msra.mxu0 %v508
    %662 = vmatpush.bf16.msra.mxu0 %v507
    %663 = vmatpush.bf16.msra.mxu0 %v506
    %664 = vmatpush.bf16.msra.mxu0 %v505
    %665 = vmatpush.bf16.msra.mxu0 %v504
    %666 = vmatpush.bf16.msra.mxu0 %v503
    %667 = vmatpush.bf16.msra.mxu0 %v502
    %668 = vmatmul.bf16.gmra.mxu0 %v188
    %v669 = vpop.f32.mrf.mxu0
    %v670 = vadd.f32 %v657, %v669
    %v671 = vpop.f32.mrf.mxu0
    %672 = vdwg.mxu0
    %673 = vmatpush.bf16.msra.mxu0 %v517
    %674 = vmatpush.bf16.msra.mxu0 %v516
    %675 = vmatpush.bf16.msra.mxu0 %v515
    %676 = vmatpush.bf16.msra.mxu0 %v514
    %677 = vmatpush.bf16.msra.mxu0 %v513
    %678 = vmatpush.bf16.msra.mxu0 %v512
    %679 = vmatpush.bf16.msra.mxu0 %v511
    %680 = vmatpush.bf16.msra.mxu0 %v510
    %681 = vmatmul.bf16.gmra.mxu0 %v189
    %v682 = vpop.f32.mrf.mxu0
    %v683 = vadd.f32 %v670, %v682
    %v684 = vpop.f32.mrf.mxu0
    %685 = vdwg.mxu0
    %v686 = vpack.c.bf16 %v683, %v683
    %v687 = vld [vmem:[%s3] sm:$0xf]
    %v688 = vld [vmem:[%s3 + $0x4] sm:$0xf]
    %v689 = vld [vmem:[%s3 + $0x8] sm:$0xf]
    %v690 = vld [vmem:[%s3 + $0xc] sm:$0xf]
    %v691 = vld [vmem:[%s4] sm:$0x1]
    %v693 = vperm.slane %v691, 0
    %v699 = vunpack.c.l.b16 %v687
    %v700 = vunpack.c.l.b16 %v688
    %v701 = vunpack.c.l.b16 %v689
    %v702 = vunpack.c.l.b16 %v690
    %v703 = vpack.c.b16 %v700, %v699
    %v704 = vpack.c.b16 %v702, %v701
    %vm707 = vcmask 261120
    %v709 = vsel %vm707, %v686, 0
    %711 = vmatpush.bf16.msra.mxu0 0
    %712 = vmatpush.bf16.msra.mxu0 0
    %713 = vmatpush.bf16.msra.mxu0 0
    %714 = vmatpush.bf16.msra.mxu0 0
    %715 = vmatpush.bf16.msra.mxu0 0
    %716 = vmatpush.bf16.msra.mxu0 0
    %717 = vmatpush.bf16.msra.mxu0 %v704
    %718 = vmatpush.bf16.msra.mxu0 %v703
    %719 = vmatmul.bf16.gmra.mxu0 %v709
    %v720 = vpop.f32.mrf.mxu0
    %v721 = vadd.f32 %v693, %v720
    %v722 = vpop.f32.mrf.mxu0
    %723 = vdwg.mxu0
    %v724 = vlaneseq
    %v725 = vshrl.u32 %v724, 7
    %vm726 = vcmp.lt.s32.totalorder %v725, 2
    %v727 = vsel %vm726, 1, 0
    %v728 = vcvt.s32.f32 %v727
    %v729 = vmul.f32 %v721, %v728
    %vm730 = vcmask 523264
    %v731 = vsel %vm730, %v729, 0.0
    %v732 = vrot.slane %v731, 4
    %v733 = vadd.f32 %v731, %v732
    %v734 = vrot.slane %v733, 2
    %v735 = vadd.f32 %v733, %v734
    %v736 = vrot.slane %v735, 1
    %v737 = vadd.f32 %v735, %v736
    %v738 = vmul.f32 %v737, 0.5
    %v739 = vsub.f32 %v721, %v738
    %v740 = vmul.f32 %v739, %v728
    %v741 = vmul.f32 %v740, %v740
    %v742 = vsel %vm730, %v741, 0.0
    %v743 = vrot.slane %v742, 4
    %v744 = vadd.f32 %v742, %v743
    %v745 = vrot.slane %v744, 2
    %v746 = vadd.f32 %v744, %v745
    %v747 = vrot.slane %v746, 1
    %v748 = vadd.f32 %v746, %v747
    %v749 = vmul.f32 %v748, 0.5
    %v750 = vld [vmem:[%s5] sm:$0x1]
    %v751 = vadd.f32 %v749, 1e-05
    %v752 = vrsqrt.pop %v751
    %v753 = vmul.f32 %v752, %v751
    %v754 = vmul.f32 %v753, %v752
    %v755 = vmul.f32 0.5, %v754
    %v756 = vsub.f32 1.5, %v755
    %v757 = vmul.f32 %v752, %v756
    %vm758 = vweird.f32 %v751
    %vm759 = vweird.f32 %v752
    %vm760 = vmor %vm758, %vm759
    %v761 = vsel %vm760, %v752, %v757
    %v762 = vmul.f32 %v750, %v761
    %v763 = vld [vmem:[%s6] sm:$0x1]
    %v764 = vmul.f32 %v738, %v762
    %v765 = vsub.f32 %v763, %v764
    %v767 = vperm.slane %v762, 0
    %v769 = vmul.f32 %v721, %v767
    %v771 = vperm.slane %v765, 0
    %v773 = vadd.f32 %v769, %v771
    %v774 = vmax.f32 %v773, 0.0
    %v775 = vpack.c.bf16 %v774, %v774
    %v776 = vld [vmem:[%s7] sm:$0xf]
    %v777 = vld [vmem:[%s7 + $0x4] sm:$0xf]
    %v778 = vld [vmem:[%s7 + $0x8] sm:$0xf]
    %v779 = vld [vmem:[%s7 + $0xc] sm:$0xf]
    %v780 = vld [vmem:[%s7 + $0x10] sm:$0xf]
    %v781 = vld [vmem:[%s7 + $0x14] sm:$0xf]
    %v782 = vld [vmem:[%s7 + $0x18] sm:$0xf]
    %v783 = vld [vmem:[%s7 + $0x1c] sm:$0xf]
    %v784 = vld [vmem:[%s8] sm:$0x1]
    %v786 = vperm.slane %v784, 0
    %v796 = vunpack.c.l.b16 %v776
    %v797 = vunpack.c.l.b16 %v777
    %v798 = vunpack.c.l.b16 %v778
    %v799 = vunpack.c.l.b16 %v779
    %v800 = vunpack.c.l.b16 %v780
    %v801 = vunpack.c.l.b16 %v781
    %v802 = vunpack.c.l.b16 %v782
    %v803 = vunpack.c.l.b16 %v783
    %v804 = vpack.c.b16 %v797, %v796
    %v805 = vpack.c.b16 %v799, %v798
    %v806 = vpack.c.b16 %v801, %v800
    %v807 = vpack.c.b16 %v803, %v802
    %v813 = vsel %vm730, %v775, 0
    %815 = vmatpush.bf16.msra.mxu0 0
    %816 = vmatpush.bf16.msra.mxu0 0
    %817 = vmatpush.bf16.msra.mxu0 0
    %818 = vmatpush.bf16.msra.mxu0 0
    %819 = vmatpush.bf16.msra.mxu0 %v807
    %820 = vmatpush.bf16.msra.mxu0 %v806
    %821 = vmatpush.bf16.msra.mxu0 %v805
    %822 = vmatpush.bf16.msra.mxu0 %v804
    %823 = vmatmul.bf16.gmra.mxu0 %v813
    %v824 = vpop.f32.mrf.mxu0
    %v825 = vadd.f32 %v786, %v824
    %v826 = vpop.f32.mrf.mxu0
    %827 = vdwg.mxu0
    %829 = vrot.lane.b32.xlu0 %v825, 32
    %v830 = vpop.permute.xlu0 %829
    %v832 = vsel %vm707, %v683, %v830
    %vm833 = vcmask 392192
    %v834 = vsel %vm833, %v832, 0.0
    %835 = vst [vmem:[#allocation2] sm:$0xff] %v834
    // Predicated region
    $region38: #{tpu_custom_call.1} parent=1 // pred_check
      _
    $region39: #{tpu_custom_call.1} parent=1 // pred_check_branch
      %837 = sbr.rel (0) target = $region41
    $region40: #{tpu_custom_call.1} parent=1 // pred_region
      %839 = vsyncadd [#allocation3], 0
      %s841 = sshll.u32 [#allocation2], 4
      %s842 = int_to_ptr.vmem [resolvable:$true] %s841
      %s843 = sshll.u32 %s9, 4
      %s844 = int_to_ptr.hbm [resolvable:$true] %s843
      %846 = dma.vmem_to_hbm [thread:$0]  %s842, 128, %s844, [#allocation3]
    $region41: #{tpu_custom_call.1} parent=1 // pred_fallthru
      _
    // Predicated region
    $region42: #{tpu_custom_call.1} parent=1 // pred_check
      _
    $region43: #{tpu_custom_call.1} parent=1 // pred_check_branch
      %848 = sbr.rel (0) target = $region45
    $region44: #{tpu_custom_call.1} parent=1 // pred_region
      %850 = dma.done [#allocation3], 128
    $region45: #{tpu_custom_call.1} parent=1 // pred_fallthru
      _
    %851 = vsyncpa [#allocation3], 1

</llo_original>
